<compile_context>
chip_gen: v7x
topology: tpu7x:2x2x1
jax: 0.10.0
libtpu: 0.0.40
codegen_flags: <defaults>
</compile_context>

<pallas_src>
import functools
import math

import jax
import jax.numpy as jnp
from jax import lax
from jax.experimental import pallas as pl
from jax.experimental.pallas import tpu as pltpu


NEG_INF = -1e30


def _round_up(n, m):
    return -(-n // m) * m


def _choose_tile(n, preferred, quantum):
    """Largest multiple of `quantum` <= preferred that divides n; otherwise the full
    axis (a block equal to the full array dim is always a legal block size)."""
    if n <= preferred:
        return n
    t = (preferred // quantum) * quantum
    while t >= quantum:
        if n % t == 0:
            return t
        t -= quantum
    return n


def _vmem_limit(est_bytes):
    # 2x headroom over the static tile-footprint estimate, clamped to [32, 64] MiB so the
    # limit is valid on every generation (v7x has 64 MiB of physical VMEM per TensorCore).
    return int(min(max(2 * est_bytes, 32 * 2 ** 20), 64 * 2 ** 20))


# ---------------------------------------------------------------------------
# Kernel 1: Q/K/V projection with N-tiled weights (bf16 MXU, f32 accumulation).
# ---------------------------------------------------------------------------
def _qkv_proj_kernel(x_ref, wq_ref, bq_ref, wk_ref, bk_ref, wv_ref, bv_ref,
                     q_ref, k_ref, v_ref):
    x = x_ref[...].astype(jnp.bfloat16)                       # (tr, H)
    q_ref[...] = (jnp.dot(x, wq_ref[...], preferred_element_type=jnp.float32)
                  + bq_ref[...]).astype(q_ref.dtype)
    k_ref[...] = (jnp.dot(x, wk_ref[...], preferred_element_type=jnp.float32)
                  + bk_ref[...]).astype(k_ref.dtype)
    v_ref[...] = (jnp.dot(x, wv_ref[...], preferred_element_type=jnp.float32)
                  + bv_ref[...]).astype(v_ref.dtype)


# ---------------------------------------------------------------------------
# Kernel 2: flash attention (online softmax, mask-tile skipping) + fused out-proj.
# ---------------------------------------------------------------------------
def _flash_attn_kernel(flags_ref, mask_ref, q_ref, k_ref, v_ref, wo_ref, bo_ref,
                       out_ref,
                       m_ref, l_ref, acc_ref, ostage_ref,
                       *, n_heads, head_size):
    b = pl.program_id(0)
    qi = pl.program_id(1)
    ki = pl.program_id(2)
    nq = pl.num_programs(1)
    nk = pl.num_programs(2)

    @pl.when(ki == 0)
    def _init():
        m_ref[...] = jnp.full(m_ref.shape, -jnp.inf, dtype=m_ref.dtype)
        l_ref[...] = jnp.zeros(l_ref.shape, dtype=l_ref.dtype)
        acc_ref[...] = jnp.zeros(acc_ref.shape, dtype=acc_ref.dtype)

    # Per-tile mask flag prefetched into SMEM: 0 = fully masked tile -> skip all work.
    flag = flags_ref[(b * nq + qi) * nk + ki]

    @pl.when(flag != 0)
    def _compute():
        # One additive bias per (q, kv) tile, shared by every head.
        bias = jnp.where(mask_ref[...] != 0, 0.0, NEG_INF).astype(jnp.float32)  # (tq, tk)

        # Per-head lane-contiguous 2-D matmuls. Softmax scale is pre-folded into q.
        for h in range(n_heads):
            sl = slice(h * head_size, (h + 1) * head_size)
            q_h = q_ref[:, sl]                                # (tq, hd) bf16
            k_h = k_ref[:, sl]                                # (tk, hd) bf16
            v_h = v_ref[:, sl]                                # (tk, hd) bf16

            s = lax.dot_general(q_h, k_h, (((1,), (1,)), ((), ())),
                                preferred_element_type=jnp.float32)
            s = s + bias                                      # (tq, tk) f32

            m_prev = m_ref[:, h:h + 1]                        # (tq, 1)
            m_new = jnp.maximum(m_prev, jnp.max(s, axis=-1, keepdims=True))
            alpha = jnp.exp(m_prev - m_new)                   # (tq, 1)
            p = jnp.exp(s - m_new)                            # (tq, tk)
            l_ref[:, h:h + 1] = (alpha * l_ref[:, h:h + 1]
                                 + jnp.sum(p, axis=-1, keepdims=True))
            # acc is a per-head slab -> no lane-unaligned RMW in the hot loop.
            acc_ref[h] = alpha * acc_ref[h] + jnp.dot(
                p.astype(jnp.bfloat16), v_h, preferred_element_type=jnp.float32)
            m_ref[:, h:h + 1] = m_new

    @pl.when(ki == nk - 1)
    def _finalize():
        for h in range(n_heads):
            sl = slice(h * head_size, (h + 1) * head_size)
            inv_l = pl.reciprocal(l_ref[:, h:h + 1], approx=True)   # EUP slot
            ostage_ref[:, sl] = (acc_ref[h] * inv_l).astype(ostage_ref.dtype)
        y = jnp.dot(ostage_ref[...], wo_ref[...],
                    preferred_element_type=jnp.float32) + bo_ref[...]
        out_ref[...] = y.astype(out_ref.dtype)


# ---------------------------------------------------------------------------
# Wrapper
# ---------------------------------------------------------------------------
def neural_attention_pallas(x, attn_mask, params, *, n_heads):
    """x: (B, T, H) f32, attn_mask: (B, T, T) int (nonzero = attend)."""
    B, T, H = x.shape
    assert H % n_heads == 0
    head_size = H // n_heads
    scale = 1.0 / math.sqrt(head_size)

    # --- tile / padding policy --------------------------------------------------
    if T <= 512:
        T_pad = _round_up(T, 8)          # rows stay a multiple of 8; full-axis attn tiles
        tq = T_pad
        tk = T_pad
    else:
        T_pad = _round_up(T, 256)
        tq = 256                         # v7x-safe default; sweep to 512 on v5e/v6e
        tk = 512 if T_pad % 512 == 0 else 256

    if T_pad != T:
        dp = T_pad - T
        x = jnp.pad(x, ((0, 0), (0, dp), (0, 0)))
        attn_mask = jnp.pad(attn_mask, ((0, 0), (0, dp), (0, dp)))   # pads are masked out

    # Softmax scale folded into the Q projection (one-time weight prep, fuses with cast).
    wq = (params["wq"] * scale).astype(jnp.bfloat16)
    bq = params["bq"] * scale
    wk = params["wk"].astype(jnp.bfloat16)
    wv = params["wv"].astype(jnp.bfloat16)
    wo = params["wo"].astype(jnp.bfloat16)
    bk, bv, bo = params["bk"], params["bv"], params["bo"]

    mask_bool = attn_mask != 0
    mask_i8 = mask_bool.astype(jnp.int8)        # 4x fewer mask bytes than int32

    # --- Kernel 1: Q/K/V projection ----------------------------------------------
    rows = B * T_pad
    x2 = x.reshape(rows, H)
    tr = _choose_tile(rows, 256, 8)
    tn = _choose_tile(H, 512, 128)
    n_i = rows // tr
    n_j = H // tn

    x_spec = pl.BlockSpec((tr, H), lambda j, i: (i, 0))     # unchanged across inner axis
    w_spec = pl.BlockSpec((H, tn), lambda j, i: (0, j))     # each weight tile fetched once
    b_spec = pl.BlockSpec((1, tn), lambda j, i: (0, j))
    o_spec = pl.BlockSpec((tr, tn), lambda j, i: (i, j))

    est1 = (2 * tr * H * 4                 # x (f32), double-buffered
            + 3 * 2 * H * tn * 2           # weights (bf16)
            + 3 * 2 * max(tn, 128) * 4     # biases (f32)
            + 3 * 2 * tr * tn * 2)         # outputs (bf16)

    q2, k2, v2 = pl.pallas_call(
        _qkv_proj_kernel,
        out_shape=tuple(jax.ShapeDtypeStruct((rows, H), jnp.bfloat16) for _ in range(3)),
        grid=(n_j, n_i),
        in_specs=[x_spec, w_spec, b_spec, w_spec, b_spec, w_spec, b_spec],
        out_specs=[o_spec, o_spec, o_spec],
        compiler_params=pltpu.CompilerParams(
            dimension_semantics=("parallel", "parallel"),
            vmem_limit_bytes=_vmem_limit(est1)),
    )(x2, wq, bq, wk, bk, wv, bv)

    q = q2.reshape(B, T_pad, H)
    k = k2.reshape(B, T_pad, H)
    v = v2.reshape(B, T_pad, H)

    # --- block-sparse mask flags (scalar prefetch) --------------------------------
    nq_t = T_pad // tq
    nk_t = T_pad // tk
    tiles = mask_bool.reshape(B, nq_t, tq, nk_t, tk)
    flags = tiles.any(axis=(2, 4)).astype(jnp.int32).reshape(-1)   # 1-D -> cheap in SMEM

    # --- Kernel 2: flash attention + fused output projection ----------------------
    kernel = functools.partial(_flash_attn_kernel,
                               n_heads=n_heads, head_size=head_size)

    acc_lane = max(head_size, 128)
    est2 = (2 * tq * tk                      # int8 mask
            + 2 * tq * H * 2                 # q (bf16)
            + 2 * 2 * tk * H * 2             # k, v (bf16)
            + 2 * H * H * 2                  # Wo (bf16) — constant index, fetched once
            + 2 * max(H, 128) * 4            # bo
            + 2 * tq * H * 4                 # out (f32)
            + 2 * tq * max(n_heads, 128) * 4     # m, l scratch (lane padded)
            + n_heads * tq * acc_lane * 4        # acc scratch (lane padded slabs)
            + tq * H * 2)                        # staged normalized output (bf16)

    grid_spec = pltpu.PrefetchScalarGridSpec(
        num_scalar_prefetch=1,
        grid=(B, nq_t, nk_t),
        in_specs=[
            pl.BlockSpec((None, tq, tk), lambda b, qi, ki, f: (b, qi, ki)),  # mask int8
            pl.BlockSpec((None, tq, H), lambda b, qi, ki, f: (b, qi, 0)),    # q bf16
            pl.BlockSpec((None, tk, H), lambda b, qi, ki, f: (b, ki, 0)),    # k bf16
            pl.BlockSpec((None, tk, H), lambda b, qi, ki, f: (b, ki, 0)),    # v bf16
            pl.BlockSpec((H, H), lambda b, qi, ki, f: (0, 0)),               # Wo bf16
            pl.BlockSpec((1, H), lambda b, qi, ki, f: (0, 0)),               # bo f32
        ],
        out_specs=pl.BlockSpec((None, tq, H), lambda b, qi, ki, f: (b, qi, 0)),
        scratch_shapes=[
            pltpu.VMEM((tq, n_heads), jnp.float32),             # running max per head
            pltpu.VMEM((tq, n_heads), jnp.float32),             # running denom per head
            pltpu.VMEM((n_heads, tq, head_size), jnp.float32),  # per-head output acc
            pltpu.VMEM((tq, H), jnp.bfloat16),                  # staged normalized output
        ],
    )

    out = pl.pallas_call(
        kernel,
        # TODO(synk): emit bf16 here if the consumer accepts it (halves output HBM write).
        out_shape=jax.ShapeDtypeStruct((B, T_pad, H), x.dtype),
        grid_spec=grid_spec,
        compiler_params=pltpu.CompilerParams(
            dimension_semantics=("parallel", "parallel", "arbitrary"),
            vmem_limit_bytes=_vmem_limit(est2)),
    )(flags, mask_i8, q, k, v, wo, bo)

    if T_pad != T:
        out = out[:, :T, :]
    return out


# ---------------------------------------------------------------------------
# Pure-JAX reference (eval mode, all f32) and parameter init
# ---------------------------------------------------------------------------
def neural_attention_ref(x, attn_mask, params, *, n_heads):
    B, T, H = x.shape
    hd = H // n_heads
    scale = 1.0 / (hd ** 0.5)

    def proj(w, b):
        return x @ w + b[0]

    q = proj(params["wq"], params["bq"]).reshape(B, T, n_heads, hd).transpose(0, 2, 1, 3)
    k = proj(params["wk"], params["bk"]).reshape(B, T, n_heads, hd).transpose(0, 2, 1, 3)
    v = proj(params["wv"], params["bv"]).reshape(B, T, n_heads, hd).transpose(0, 2, 1, 3)

    scores = jnp.einsum('bhtd,bhsd->bhts', q, k) * scale
    mask = (attn_mask != 0)[:, None, :, :]
    scores = jnp.where(mask, scores, NEG_INF)
    p = jax.nn.softmax(scores, axis=-1)
    o = jnp.einsum('bhts,bhsd->bhtd', p, v)
    o = o.transpose(0, 2, 1, 3).reshape(B, T, H)
    return o @ params["wo"] + params["bo"][0]


def make_params(key, hidden_size):
    """Deterministic parameter init. Weights stored as (in, out) = W.T of nn.Linear."""
    ks = jax.random.split(key, 8)
    s = 1.0 / (hidden_size ** 0.5)

    def w(k):
        return jax.random.uniform(k, (hidden_size, hidden_size), jnp.float32, -s, s)

    def b(k):
        return jax.random.uniform(k, (1, hidden_size), jnp.float32, -s, s)

    return {
        "wq": w(ks[0]), "bq": b(ks[1]),
        "wk": w(ks[2]), "bk": b(ks[3]),
        "wv": w(ks[4]), "bv": b(ks[5]),
        "wo": w(ks[6]), "bo": b(ks[7]),
    }


if __name__ == "__main__":
    B, T, HIDDEN, N_HEADS = 2, 8, 32, 4

    key = jax.random.PRNGKey(0)
    kx, kp, km = jax.random.split(key, 3)

    x = jax.random.normal(kx, (B, T, HIDDEN), jnp.float32)
    # Random but non-degenerate mask (nonzero = attend); make sure the diagonal attends.
    mask = (jax.random.uniform(km, (B, T, T)) > 0.3).astype(jnp.int32)
    mask = jnp.maximum(mask, jnp.eye(T, dtype=jnp.int32)[None])

    params = make_params(kp, HIDDEN)

    out = neural_attention_pallas(x, mask, params, n_heads=N_HEADS)
    out = jax.block_until_ready(out)

    ref = neural_attention_ref(x, mask, params, n_heads=N_HEADS)
    assert out.shape == (B, T, HIDDEN)
    # bf16 MXU matmuls (f32 accumulation) + approx reciprocal => loosened tolerance.
    max_err = float(jnp.max(jnp.abs(out - ref)))
    assert jnp.allclose(out, ref, atol=2e-2, rtol=2e-2), f"mismatch vs reference ({max_err})"

    print("KERNEL_OK")
</pallas_src>

<mosaic_0001>
module attributes {stable_mosaic.version = 11 : i64} {
  func.func @_qkv_proj_kernel(%arg0: i32, %arg1: i32, %arg2: memref<16x32xf32, #tpu.memory_space<vmem>>, %arg3: memref<32x32xbf16, #tpu.memory_space<vmem>>, %arg4: memref<1x32xf32, #tpu.memory_space<vmem>>, %arg5: memref<32x32xbf16, #tpu.memory_space<vmem>>, %arg6: memref<1x32xf32, #tpu.memory_space<vmem>>, %arg7: memref<32x32xbf16, #tpu.memory_space<vmem>>, %arg8: memref<1x32xf32, #tpu.memory_space<vmem>>, %arg9: memref<16x32xbf16, #tpu.memory_space<vmem>>, %arg10: memref<16x32xbf16, #tpu.memory_space<vmem>>, %arg11: memref<16x32xbf16, #tpu.memory_space<vmem>>) attributes {dimension_semantics = [#tpu.dimension_semantics<parallel>, #tpu.dimension_semantics<parallel>], iteration_bounds = array<i64: 1, 1>, scalar_prefetch = 0 : i64, scratch_operands = 0 : i64, tpu.core_type = #tpu.core_type<tc>, window_params = [{transform_indices = @transform_0, window_bounds = array<i64: 16, 32>}, {transform_indices = @transform_1, window_bounds = array<i64: 32, 32>}, {transform_indices = @transform_2, window_bounds = array<i64: 1, 32>}, {transform_indices = @transform_3, window_bounds = array<i64: 32, 32>}, {transform_indices = @transform_4, window_bounds = array<i64: 1, 32>}, {transform_indices = @transform_5, window_bounds = array<i64: 32, 32>}, {transform_indices = @transform_6, window_bounds = array<i64: 1, 32>}, {transform_indices = @transform_7, window_bounds = array<i64: 16, 32>}, {transform_indices = @transform_8, window_bounds = array<i64: 16, 32>}, {transform_indices = @transform_9, window_bounds = array<i64: 16, 32>}]} {
    %c0 = arith.constant 0 : index
    %c0_0 = arith.constant 0 : index
    %0 = vector.load %arg2[%c0, %c0_0] : memref<16x32xf32, #tpu.memory_space<vmem>>, vector<16x32xf32>
    %1 = arith.truncf %0 : vector<16x32xf32> to vector<16x32xbf16>
    %c0_1 = arith.constant 0 : index
    %c0_2 = arith.constant 0 : index
    %2 = vector.load %arg3[%c0_1, %c0_2] : memref<32x32xbf16, #tpu.memory_space<vmem>>, vector<32x32xbf16>
    %cst = arith.constant dense<0.000000e+00> : vector<16x32xf32>
    %3 = tpu.matmul %1, %2, %cst {dimension_numbers = #tpu.dot_dimension_numbers<[1], [0], [0], [1], [0, 0, 1, 1], [], []>} : vector<16x32xbf16>, vector<32x32xbf16>, vector<16x32xf32> -> vector<16x32xf32>
    %c0_3 = arith.constant 0 : index
    %c0_4 = arith.constant 0 : index
    %4 = vector.load %arg4[%c0_3, %c0_4] : memref<1x32xf32, #tpu.memory_space<vmem>>, vector<1x32xf32>
    %5 = vector.broadcast %4 : vector<1x32xf32> to vector<16x32xf32>
    %6 = arith.addf %3, %5 : vector<16x32xf32>
    %7 = arith.truncf %6 : vector<16x32xf32> to vector<16x32xbf16>
    %c0_5 = arith.constant 0 : index
    %c0_6 = arith.constant 0 : index
    %8 = vector.load %arg9[%c0_5, %c0_6] : memref<16x32xbf16, #tpu.memory_space<vmem>>, vector<16x32xbf16>
    tpu.vector_store %arg9[%c0_5, %c0_6], %7 {strides = array<i32>} : memref<16x32xbf16, #tpu.memory_space<vmem>>, vector<16x32xbf16>,
    %c0_7 = arith.constant 0 : index
    %c0_8 = arith.constant 0 : index
    %9 = vector.load %arg5[%c0_7, %c0_8] : memref<32x32xbf16, #tpu.memory_space<vmem>>, vector<32x32xbf16>
    %cst_9 = arith.constant dense<0.000000e+00> : vector<16x32xf32>
    %10 = tpu.matmul %1, %9, %cst_9 {dimension_numbers = #tpu.dot_dimension_numbers<[1], [0], [0], [1], [0, 0, 1, 1], [], []>} : vector<16x32xbf16>, vector<32x32xbf16>, vector<16x32xf32> -> vector<16x32xf32>
    %c0_10 = arith.constant 0 : index
    %c0_11 = arith.constant 0 : index
    %11 = vector.load %arg6[%c0_10, %c0_11] : memref<1x32xf32, #tpu.memory_space<vmem>>, vector<1x32xf32>
    %12 = vector.broadcast %11 : vector<1x32xf32> to vector<16x32xf32>
    %13 = arith.addf %10, %12 : vector<16x32xf32>
    %14 = arith.truncf %13 : vector<16x32xf32> to vector<16x32xbf16>
    %c0_12 = arith.constant 0 : index
    %c0_13 = arith.constant 0 : index
    %15 = vector.load %arg10[%c0_12, %c0_13] : memref<16x32xbf16, #tpu.memory_space<vmem>>, vector<16x32xbf16>
    tpu.vector_store %arg10[%c0_12, %c0_13], %14 {strides = array<i32>} : memref<16x32xbf16, #tpu.memory_space<vmem>>, vector<16x32xbf16>,
    %c0_14 = arith.constant 0 : index
    %c0_15 = arith.constant 0 : index
    %16 = vector.load %arg7[%c0_14, %c0_15] : memref<32x32xbf16, #tpu.memory_space<vmem>>, vector<32x32xbf16>
    %cst_16 = arith.constant dense<0.000000e+00> : vector<16x32xf32>
    %17 = tpu.matmul %1, %16, %cst_16 {dimension_numbers = #tpu.dot_dimension_numbers<[1], [0], [0], [1], [0, 0, 1, 1], [], []>} : vector<16x32xbf16>, vector<32x32xbf16>, vector<16x32xf32> -> vector<16x32xf32>
    %c0_17 = arith.constant 0 : index
    %c0_18 = arith.constant 0 : index
    %18 = vector.load %arg8[%c0_17, %c0_18] : memref<1x32xf32, #tpu.memory_space<vmem>>, vector<1x32xf32>
    %19 = vector.broadcast %18 : vector<1x32xf32> to vector<16x32xf32>
    %20 = arith.addf %17, %19 : vector<16x32xf32>
    %21 = arith.truncf %20 : vector<16x32xf32> to vector<16x32xbf16>
    %c0_19 = arith.constant 0 : index
    %c0_20 = arith.constant 0 : index
    %22 = vector.load %arg11[%c0_19, %c0_20] : memref<16x32xbf16, #tpu.memory_space<vmem>>, vector<16x32xbf16>
    tpu.vector_store %arg11[%c0_19, %c0_20], %21 {strides = array<i32>} : memref<16x32xbf16, #tpu.memory_space<vmem>>, vector<16x32xbf16>,
    return
  }
  func.func @transform_0(%arg0: i32, %arg1: i32) -> (i32, i32) {
    %c0_i32 = arith.constant 0 : i32
    %c0_i32_0 = arith.constant 0 : i32
    return %arg1, %c0_i32 : i32, i32
  }
  func.func @transform_1(%arg0: i32, %arg1: i32) -> (i32, i32) {
    %c0_i32 = arith.constant 0 : i32
    %c0_i32_0 = arith.constant 0 : i32
    return %c0_i32, %arg0 : i32, i32
  }
  func.func @transform_2(%arg0: i32, %arg1: i32) -> (i32, i32) {
    %c0_i32 = arith.constant 0 : i32
    %c0_i32_0 = arith.constant 0 : i32
    return %c0_i32, %arg0 : i32, i32
  }
  func.func @transform_3(%arg0: i32, %arg1: i32) -> (i32, i32) {
    %c0_i32 = arith.constant 0 : i32
    %c0_i32_0 = arith.constant 0 : i32
    return %c0_i32, %arg0 : i32, i32
  }
  func.func @transform_4(%arg0: i32, %arg1: i32) -> (i32, i32) {
    %c0_i32 = arith.constant 0 : i32
    %c0_i32_0 = arith.constant 0 : i32
    return %c0_i32, %arg0 : i32, i32
  }
  func.func @transform_5(%arg0: i32, %arg1: i32) -> (i32, i32) {
    %c0_i32 = arith.constant 0 : i32
    %c0_i32_0 = arith.constant 0 : i32
    return %c0_i32, %arg0 : i32, i32
  }
  func.func @transform_6(%arg0: i32, %arg1: i32) -> (i32, i32) {
    %c0_i32 = arith.constant 0 : i32
    %c0_i32_0 = arith.constant 0 : i32
    return %c0_i32, %arg0 : i32, i32
  }
  func.func @transform_7(%arg0: i32, %arg1: i32) -> (i32, i32) {
    %c0_i32 = arith.constant 0 : i32
    return %arg1, %arg0 : i32, i32
  }
  func.func @transform_8(%arg0: i32, %arg1: i32) -> (i32, i32) {
    %c0_i32 = arith.constant 0 : i32
    return %arg1, %arg0 : i32, i32
  }
  func.func @transform_9(%arg0: i32, %arg1: i32) -> (i32, i32) {
    %c0_i32 = arith.constant 0 : i32
    return %arg1, %arg0 : i32, i32
  }
}

</mosaic_0001>

<llo_original>
// kernel: tpu_custom_call.1
$region0: #{tpu_custom_call.1}
  #allocation0 [shape = 'u32[]', space=smem, size = 0x4, offset = 0x4, fixed_abs, tag = 'smem constant byte address 0x4 - core index']
  #allocation1 [shape = 'u32[144,128]{1,0:T(1,128)}', space=vmem, size = 0x12000, scoped, tag = 'internal scratch']
  %s0 = inlined_call_operand.hbm [shape: f32[16,32], index: 0, kind: input, shape index: {}]
  %s1 = inlined_call_operand.hbm [shape: bf16[32,32], index: 1, kind: input, shape index: {}]
  %s2 = inlined_call_operand.vmem [shape: f32[1,32], index: 2, kind: input, shape index: {}]
  %s3 = inlined_call_operand.hbm [shape: bf16[32,32], index: 3, kind: input, shape index: {}]
  %s4 = inlined_call_operand.vmem [shape: f32[1,32], index: 4, kind: input, shape index: {}]
  %s5 = inlined_call_operand.vmem [shape: bf16[32,32], index: 5, kind: input, shape index: {}]
  %s6 = inlined_call_operand.vmem [shape: f32[1,32], index: 6, kind: input, shape index: {}]
  %s7 = inlined_call_operand.hbm [shape: bf16[16,32], index: 7, kind: output, shape index: {0}]
  %s8 = inlined_call_operand.hbm [shape: bf16[16,32], index: 8, kind: output, shape index: {1}]
  %s9 = inlined_call_operand.hbm [shape: bf16[16,32], index: 9, kind: output, shape index: {2}]
  %10 = xla_tuple %s7, %s8, %s9
  %s11 = sld [smem:[#allocation0]]
  $region66: #{tpu_custom_call.1} parent=0
    _
  %s13 = ssub.s32 1, %s11
  %s14 = scalar_select 0, %s13, %s11
  $region1: #{tpu_custom_call.1} parent=0
    #allocation2 [shape = 'u8[8192]{0}', space=vmem, size = 0x2000, scoped, tag = 'input window, operand 0, single buffered']
    #allocation3 [shape = 's32[1]{0}', space=sflag, size = 0x4, scoped, tag = 'scoped memory for tpu_custom_call.1']
    #allocation4 [shape = 's32[1]{0}', space=sflag, size = 0x4, scoped, tag = 'scoped memory for tpu_custom_call.1']
    #allocation5 [shape = 'u8[8192]{0}', space=vmem, size = 0x2000, scoped, tag = 'input window, operand 1, single buffered']
    #allocation6 [shape = 's32[1]{0}', space=sflag, size = 0x4, scoped, tag = 'scoped memory for tpu_custom_call.1']
    #allocation7 [shape = 'u8[8192]{0}', space=vmem, size = 0x2000, scoped, tag = 'input window, operand 3, single buffered']
    #allocation8 [shape = 'u8[4096]{0}', space=vmem, size = 0x1000, scoped, tag = 'output window, operand 0, single buffered']
    #allocation9 [shape = 'u8[4096]{0}', space=vmem, size = 0x1000, scoped, tag = 'output window, operand 1, single buffered']
    #allocation10 [shape = 's32[1]{0}', space=sflag, size = 0x4, scoped, tag = 'scoped memory for tpu_custom_call.1']
    #allocation11 [shape = 'u8[4096]{0}', space=vmem, size = 0x1000, scoped, tag = 'output window, operand 2, single buffered']
    %15 = vsyncpa [#allocation3], 0
    %16 = vsyncpa [#allocation6], 0
    %17 = vsyncpa [#allocation4], 0
    %18 = vsyncpa [#allocation10], 0
    // Predicated region
    $region2: #{tpu_custom_call.1} parent=1 // pred_check
      _
    $region3: #{tpu_custom_call.1} parent=1 // pred_check_branch
      %20 = sbr.rel (0) target = $region5
    $region4: #{tpu_custom_call.1} parent=1 // pred_region
      %s22 = ssub.s32 256, 256
      %23 = vsyncadd [#allocation3], %s22
      %s24 = sshll.u32 [#allocation2], 4
      %s25 = int_to_ptr.vmem [resolvable:$true] %s24
      %30 = dma.hbm_to_vmem [thread:$0]  %s0, 256, %s25, [#allocation3], 128, 128, 8
    $region5: #{tpu_custom_call.1} parent=1 // pred_fallthru
      _
    // Predicated region
    $region6: #{tpu_custom_call.1} parent=1 // pred_check
      _
    $region7: #{tpu_custom_call.1} parent=1 // pred_check_branch
      %32 = sbr.rel (0) target = $region9
    $region8: #{tpu_custom_call.1} parent=1 // pred_region
      %s34 = ssub.s32 256, 256
      %35 = vsyncadd [#allocation6], %s34
      %s36 = sshll.u32 [#allocation5], 4
      %s37 = int_to_ptr.vmem [resolvable:$true] %s36
      %42 = dma.hbm_to_vmem [thread:$0]  %s1, 256, %s37, [#allocation6], 64, 64, 4
    $region9: #{tpu_custom_call.1} parent=1 // pred_fallthru
      _
    // Predicated region
    $region10: #{tpu_custom_call.1} parent=1 // pred_check
      _
    $region11: #{tpu_custom_call.1} parent=1 // pred_check_branch
      %44 = sbr.rel (0) target = $region13
    $region12: #{tpu_custom_call.1} parent=1 // pred_region
      _
    $region13: #{tpu_custom_call.1} parent=1 // pred_fallthru
      _
    // Predicated region
    $region14: #{tpu_custom_call.1} parent=1 // pred_check
      _
    $region15: #{tpu_custom_call.1} parent=1 // pred_check_branch
      %46 = sbr.rel (0) target = $region17
    $region16: #{tpu_custom_call.1} parent=1 // pred_region
      %s48 = ssub.s32 256, 256
      %49 = vsyncadd [#allocation6], %s48
      %s50 = sshll.u32 [#allocation7], 4
      %s51 = int_to_ptr.vmem [resolvable:$true] %s50
      %56 = dma.hbm_to_vmem [thread:$0]  %s3, 256, %s51, [#allocation6], 64, 64, 4
    $region17: #{tpu_custom_call.1} parent=1 // pred_fallthru
      _
    // Predicated region
    $region18: #{tpu_custom_call.1} parent=1 // pred_check
      _
    $region19: #{tpu_custom_call.1} parent=1 // pred_check_branch
      %58 = sbr.rel (0) target = $region21
    $region20: #{tpu_custom_call.1} parent=1 // pred_region
      _
    $region21: #{tpu_custom_call.1} parent=1 // pred_fallthru
      _
    // Predicated region
    $region22: #{tpu_custom_call.1} parent=1 // pred_check
      _
    $region23: #{tpu_custom_call.1} parent=1 // pred_check_branch
      %60 = sbr.rel (0) target = $region25
    $region24: #{tpu_custom_call.1} parent=1 // pred_region
      _
    $region25: #{tpu_custom_call.1} parent=1 // pred_fallthru
      _
    // Predicated region
    $region26: #{tpu_custom_call.1} parent=1 // pred_check
      _
    $region27: #{tpu_custom_call.1} parent=1 // pred_check_branch
      %62 = sbr.rel (0) target = $region29
    $region28: #{tpu_custom_call.1} parent=1 // pred_region
      _
    $region29: #{tpu_custom_call.1} parent=1 // pred_fallthru
      _
    // Predicated region
    $region30: #{tpu_custom_call.1} parent=1 // pred_check
      _
    $region31: #{tpu_custom_call.1} parent=1 // pred_check_branch
      %64 = sbr.rel (0) target = $region33
    $region32: #{tpu_custom_call.1} parent=1 // pred_region
      %65 = dma.done [#allocation3], 256
    $region33: #{tpu_custom_call.1} parent=1 // pred_fallthru
      _
    // Predicated region
    $region34: #{tpu_custom_call.1} parent=1 // pred_check
      _
    $region35: #{tpu_custom_call.1} parent=1 // pred_check_branch
      %67 = sbr.rel (0) target = $region37
    $region36: #{tpu_custom_call.1} parent=1 // pred_region
      %68 = dma.done [#allocation6], 256
    $region37: #{tpu_custom_call.1} parent=1 // pred_fallthru
      _
    // Predicated region
    $region38: #{tpu_custom_call.1} parent=1 // pred_check
      _
    $region39: #{tpu_custom_call.1} parent=1 // pred_check_branch
      %70 = sbr.rel (0) target = $region41
    $region40: #{tpu_custom_call.1} parent=1 // pred_region
      %71 = dma.done [#allocation6], 256
    $region41: #{tpu_custom_call.1} parent=1 // pred_fallthru
      _
    %v73 = vld [vmem:[#allocation2] sm:$0xff]
    %v74 = vld [vmem:[#allocation2 + $0x8] sm:$0xff]
    %v75 = vpack.c.bf16 %v74, %v73
    %v76 = vld [vmem:[#allocation5] sm:$0xf]
    %v77 = vld [vmem:[#allocation5 + $0x4] sm:$0xf]
    %v78 = vld [vmem:[#allocation5 + $0x8] sm:$0xf]
    %v79 = vld [vmem:[#allocation5 + $0xc] sm:$0xf]
    %v80 = vld [vmem:[%s2] sm:$0x1]
    %v82 = vlaneseq
    %v83 = vshrl.u32 %v82, 7
    %v84 = vsub.s32 0, %v83
    %v85 = vrot.slane %v80, %v84
    %v91 = vunpack.c.l.b16 %v76
    %v92 = vunpack.c.l.b16 %v77
    %v93 = vunpack.c.l.b16 %v78
    %v94 = vunpack.c.l.b16 %v79
    %v95 = vpack.c.b16 %v92, %v91
    %v96 = vpack.c.b16 %v94, %v93
    %vm99 = vcmask 261120
    %v101 = vsel %vm99, %v75, 0
    %103 = vmatprep.subr.bf16.mxu0 0
    %104 = vmatpush1.bf16.msra.mxu0 %v95
    %105 = vmatprep.subr.bf16.mxu0 0
    %106 = vmatpush1.bf16.msra.mxu0 %v96
    %107 = vmatprep.subr.bf16.mxu0 0
    %108 = vmatpush1.bf16.msra.mxu0 0
    %109 = vmatprep.subr.bf16.mxu0 0
    %110 = vmatpush1.bf16.msra.mxu0 0
    %111 = vmatprep.subr.bf16.mxu0 0
    %112 = vmatpush1.bf16.msra.mxu0 0
    %113 = vmatprep.subr.bf16.mxu0 0
    %114 = vmatpush1.bf16.msra.mxu0 0
    %115 = vmatprep.subr.bf16.mxu0 0
    %116 = vmatpush1.bf16.msra.mxu0 0
    %117 = vmatprep.subr.bf16.mxu0 0
    %118 = vmatpush1.bf16.msra.mxu0 0
    %119 = vmatprep.subr.bf16.mxu0 0
    %120 = vmatpush1.bf16.msra.mxu0 0
    %121 = vmatprep.subr.bf16.mxu0 0
    %122 = vmatpush1.bf16.msra.mxu0 0
    %123 = vmatprep.subr.bf16.mxu0 0
    %124 = vmatpush1.bf16.msra.mxu0 0
    %125 = vmatprep.subr.bf16.mxu0 0
    %126 = vmatpush1.bf16.msra.mxu0 0
    %127 = vmatprep.subr.bf16.mxu0 0
    %128 = vmatpush1.bf16.msra.mxu0 0
    %129 = vmatprep.subr.bf16.mxu0 0
    %130 = vmatpush1.bf16.msra.mxu0 0
    %131 = vmatprep.subr.bf16.mxu0 0
    %132 = vmatpush1.bf16.msra.mxu0 0
    %133 = vmatprep.subr.bf16.mxu0 0
    %134 = vmatpush1.bf16.msra.mxu0 0
    %135 = vmatprep.mubr.bf16.mxu0 0
    %136 = vmatmul.mubr.bf16.gmra.mrb[0].mxu0 %v101
    %v137 = vpop.f32.mrb[0].mxu0
    %v138 = vadd.f32 %v85, %v137
    %v139 = vpop.f32.mrb[0].mxu0
    %v140 = vpop.f32.mrb[0].mxu0
    %v141 = vadd.f32 %v85, %v140
    %v142 = vpop.f32.mrb[0].mxu0
    %143 = vdwg.mxu0
    %v144 = vpack.c.bf16 %v141, %v138
    %v146 = vunpack.c.l.b16 %v144
    %v147 = vunpack.c.h.b16 %v144
    %v148 = vpack.c.b16 %v146, %v146
    %v149 = vpack.c.b16 %v147, %v147
    %vm152 = vcmask 257024
    %153 = vst.msk [vmem:[#allocation8] sm:$0xf] %vm152, %v148
    %154 = vst.msk [vmem:[#allocation8 + $0x4] sm:$0xf] %vm152, %v149
    %v155 = vld [vmem:[#allocation7] sm:$0xf]
    %v156 = vld [vmem:[#allocation7 + $0x4] sm:$0xf]
    %v157 = vld [vmem:[#allocation7 + $0x8] sm:$0xf]
    %v158 = vld [vmem:[#allocation7 + $0xc] sm:$0xf]
    %v159 = vld [vmem:[%s4] sm:$0x1]
    %v161 = vlaneseq
    %v162 = vshrl.u32 %v161, 7
    %v163 = vsub.s32 0, %v162
    %v164 = vrot.slane %v159, %v163
    %v170 = vunpack.c.l.b16 %v155
    %v171 = vunpack.c.l.b16 %v156
    %v172 = vunpack.c.l.b16 %v157
    %v173 = vunpack.c.l.b16 %v158
    %v174 = vpack.c.b16 %v171, %v170
    %v175 = vpack.c.b16 %v173, %v172
    %178 = vmatprep.subr.bf16.mxu0 0
    %179 = vmatpush1.bf16.msra.mxu0 %v174
    %180 = vmatprep.subr.bf16.mxu0 0
    %181 = vmatpush1.bf16.msra.mxu0 %v175
    %182 = vmatprep.subr.bf16.mxu0 0
    %183 = vmatpush1.bf16.msra.mxu0 0
    %184 = vmatprep.subr.bf16.mxu0 0
    %185 = vmatpush1.bf16.msra.mxu0 0
    %186 = vmatprep.subr.bf16.mxu0 0
    %187 = vmatpush1.bf16.msra.mxu0 0
    %188 = vmatprep.subr.bf16.mxu0 0
    %189 = vmatpush1.bf16.msra.mxu0 0
    %190 = vmatprep.subr.bf16.mxu0 0
    %191 = vmatpush1.bf16.msra.mxu0 0
    %192 = vmatprep.subr.bf16.mxu0 0
    %193 = vmatpush1.bf16.msra.mxu0 0
    %194 = vmatprep.subr.bf16.mxu0 0
    %195 = vmatpush1.bf16.msra.mxu0 0
    %196 = vmatprep.subr.bf16.mxu0 0
    %197 = vmatpush1.bf16.msra.mxu0 0
    %198 = vmatprep.subr.bf16.mxu0 0
    %199 = vmatpush1.bf16.msra.mxu0 0
    %200 = vmatprep.subr.bf16.mxu0 0
    %201 = vmatpush1.bf16.msra.mxu0 0
    %202 = vmatprep.subr.bf16.mxu0 0
    %203 = vmatpush1.bf16.msra.mxu0 0
    %204 = vmatprep.subr.bf16.mxu0 0
    %205 = vmatpush1.bf16.msra.mxu0 0
    %206 = vmatprep.subr.bf16.mxu0 0
    %207 = vmatpush1.bf16.msra.mxu0 0
    %208 = vmatprep.subr.bf16.mxu0 0
    %209 = vmatpush1.bf16.msra.mxu0 0
    %210 = vmatprep.mubr.bf16.mxu0 0
    %211 = vmatmul.mubr.bf16.gmra.mrb[0].mxu0 %v101
    %v212 = vpop.f32.mrb[0].mxu0
    %v213 = vadd.f32 %v164, %v212
    %v214 = vpop.f32.mrb[0].mxu0
    %v215 = vpop.f32.mrb[0].mxu0
    %v216 = vadd.f32 %v164, %v215
    %v217 = vpop.f32.mrb[0].mxu0
    %218 = vdwg.mxu0
    %v219 = vpack.c.bf16 %v216, %v213
    %v221 = vunpack.c.l.b16 %v219
    %v222 = vunpack.c.h.b16 %v219
    %v223 = vpack.c.b16 %v221, %v221
    %v224 = vpack.c.b16 %v222, %v222
    %227 = vst.msk [vmem:[#allocation9] sm:$0xf] %vm152, %v223
    %228 = vst.msk [vmem:[#allocation9 + $0x4] sm:$0xf] %vm152, %v224
    %v229 = vld [vmem:[%s5] sm:$0xf]
    %v230 = vld [vmem:[%s5 + $0x4] sm:$0xf]
    %v231 = vld [vmem:[%s5 + $0x8] sm:$0xf]
    %v232 = vld [vmem:[%s5 + $0xc] sm:$0xf]
    %v233 = vld [vmem:[%s6] sm:$0x1]
    %v235 = vlaneseq
    %v236 = vshrl.u32 %v235, 7
    %v237 = vsub.s32 0, %v236
    %v238 = vrot.slane %v233, %v237
    %v244 = vunpack.c.l.b16 %v229
    %v245 = vunpack.c.l.b16 %v230
    %v246 = vunpack.c.l.b16 %v231
    %v247 = vunpack.c.l.b16 %v232
    %v248 = vpack.c.b16 %v245, %v244
    %v249 = vpack.c.b16 %v247, %v246
    %252 = vmatprep.subr.bf16.mxu0 0
    %253 = vmatpush1.bf16.msra.mxu0 %v248
    %254 = vmatprep.subr.bf16.mxu0 0
    %255 = vmatpush1.bf16.msra.mxu0 %v249
    %256 = vmatprep.subr.bf16.mxu0 0
    %257 = vmatpush1.bf16.msra.mxu0 0
    %258 = vmatprep.subr.bf16.mxu0 0
    %259 = vmatpush1.bf16.msra.mxu0 0
    %260 = vmatprep.subr.bf16.mxu0 0
    %261 = vmatpush1.bf16.msra.mxu0 0
    %262 = vmatprep.subr.bf16.mxu0 0
    %263 = vmatpush1.bf16.msra.mxu0 0
    %264 = vmatprep.subr.bf16.mxu0 0
    %265 = vmatpush1.bf16.msra.mxu0 0
    %266 = vmatprep.subr.bf16.mxu0 0
    %267 = vmatpush1.bf16.msra.mxu0 0
    %268 = vmatprep.subr.bf16.mxu0 0
    %269 = vmatpush1.bf16.msra.mxu0 0
    %270 = vmatprep.subr.bf16.mxu0 0
    %271 = vmatpush1.bf16.msra.mxu0 0
    %272 = vmatprep.subr.bf16.mxu0 0
    %273 = vmatpush1.bf16.msra.mxu0 0
    %274 = vmatprep.subr.bf16.mxu0 0
    %275 = vmatpush1.bf16.msra.mxu0 0
    %276 = vmatprep.subr.bf16.mxu0 0
    %277 = vmatpush1.bf16.msra.mxu0 0
    %278 = vmatprep.subr.bf16.mxu0 0
    %279 = vmatpush1.bf16.msra.mxu0 0
    %280 = vmatprep.subr.bf16.mxu0 0
    %281 = vmatpush1.bf16.msra.mxu0 0
    %282 = vmatprep.subr.bf16.mxu0 0
    %283 = vmatpush1.bf16.msra.mxu0 0
    %284 = vmatprep.mubr.bf16.mxu0 0
    %285 = vmatmul.mubr.bf16.gmra.mrb[0].mxu0 %v101
    %v286 = vpop.f32.mrb[0].mxu0
    %v287 = vadd.f32 %v238, %v286
    %v288 = vpop.f32.mrb[0].mxu0
    %v289 = vpop.f32.mrb[0].mxu0
    %v290 = vadd.f32 %v238, %v289
    %v291 = vpop.f32.mrb[0].mxu0
    %292 = vdwg.mxu0
    %v293 = vpack.c.bf16 %v290, %v287
    %v295 = vunpack.c.l.b16 %v293
    %v296 = vunpack.c.h.b16 %v293
    %v297 = vpack.c.b16 %v295, %v295
    %v298 = vpack.c.b16 %v296, %v296
    %301 = vst.msk [vmem:[#allocation11] sm:$0xf] %vm152, %v297
    %302 = vst.msk [vmem:[#allocation11 + $0x4] sm:$0xf] %vm152, %v298
    // Predicated region
    $region42: #{tpu_custom_call.1} parent=1 // pred_check
      _
    $region43: #{tpu_custom_call.1} parent=1 // pred_check_branch
      %304 = sbr.rel (0) target = $region45
    $region44: #{tpu_custom_call.1} parent=1 // pred_region
      %s306 = ssub.s32 128, 128
      %307 = vsyncadd [#allocation4], %s306
      %s308 = sshll.u32 [#allocation8], 4
      %s309 = int_to_ptr.vmem [resolvable:$true] %s308
      %314 = dma.vmem_to_hbm [thread:$0]  %s309, 128, %s7, [#allocation4], 64, 64, 4
    $region45: #{tpu_custom_call.1} parent=1 // pred_fallthru
      _
    // Predicated region
    $region46: #{tpu_custom_call.1} parent=1 // pred_check
      _
    $region47: #{tpu_custom_call.1} parent=1 // pred_check_branch
      %316 = sbr.rel (0) target = $region49
    $region48: #{tpu_custom_call.1} parent=1 // pred_region
      %s318 = ssub.s32 128, 128
      %319 = vsyncadd [#allocation10], %s318
      %s320 = sshll.u32 [#allocation9], 4
      %s321 = int_to_ptr.vmem [resolvable:$true] %s320
      %326 = dma.vmem_to_hbm [thread:$0]  %s321, 128, %s8, [#allocation10], 64, 64, 4
    $region49: #{tpu_custom_call.1} parent=1 // pred_fallthru
      _
    // Predicated region
    $region50: #{tpu_custom_call.1} parent=1 // pred_check
      _
    $region51: #{tpu_custom_call.1} parent=1 // pred_check_branch
      %328 = sbr.rel (0) target = $region53
    $region52: #{tpu_custom_call.1} parent=1 // pred_region
      %s330 = ssub.s32 128, 128
      %331 = vsyncadd [#allocation10], %s330
      %s332 = sshll.u32 [#allocation11], 4
      %s333 = int_to_ptr.vmem [resolvable:$true] %s332
      %338 = dma.vmem_to_hbm [thread:$0]  %s333, 128, %s9, [#allocation10], 64, 64, 4
    $region53: #{tpu_custom_call.1} parent=1 // pred_fallthru
      _
    // Predicated region
    $region54: #{tpu_custom_call.1} parent=1 // pred_check
      _
    $region55: #{tpu_custom_call.1} parent=1 // pred_check_branch
      %340 = sbr.rel (0) target = $region57
    $region56: #{tpu_custom_call.1} parent=1 // pred_region
      %341 = dma.done [#allocation4], 128
    $region57: #{tpu_custom_call.1} parent=1 // pred_fallthru
      _
    // Predicated region
    $region58: #{tpu_custom_call.1} parent=1 // pred_check
      _
    $region59: #{tpu_custom_call.1} parent=1 // pred_check_branch
      %343 = sbr.rel (0) target = $region61
    $region60: #{tpu_custom_call.1} parent=1 // pred_region
      %344 = dma.done [#allocation10], 128
    $region61: #{tpu_custom_call.1} parent=1 // pred_fallthru
      _
    // Predicated region
    $region62: #{tpu_custom_call.1} parent=1 // pred_check
      _
    $region63: #{tpu_custom_call.1} parent=1 // pred_check_branch
      %346 = sbr.rel (0) target = $region65
    $region64: #{tpu_custom_call.1} parent=1 // pred_region
      %347 = dma.done [#allocation10], 128
    $region65: #{tpu_custom_call.1} parent=1 // pred_fallthru
      _
    %348 = vsyncpa [#allocation3], 1
    %349 = vsyncpa [#allocation6], 1
    %350 = vsyncpa [#allocation4], 1
    %351 = vsyncpa [#allocation10], 1

</llo_original>
